<compile_context>
chip_gen: v5e
topology: v5e:2x2
jax: 0.10.0
libtpu: 0.0.40
codegen_flags: <defaults>
</compile_context>

<pallas_src>
import functools

import jax
import jax.numpy as jnp
from jax.experimental import pallas as pl
from jax.experimental.pallas import tpu as pltpu

EPS = 1e-5
_VMEM_LIMIT = 32 * 1024 * 1024  # explicit scoped-VMEM budget (safe on v5e/v6e/v7x)


def _pick_tile(dim, quantum, cap):
    """Largest tile <= cap that is a multiple of `quantum` and divides `dim`.
    Falls back to the full dim (always a legal trailing block dim)."""
    if dim % quantum == 0 and dim >= quantum:
        t = min(cap, dim)
        t -= t % quantum
        while dim % t != 0:
            t -= quantum
        return t
    return dim


# ----------------------------------------------------------------------------
# Stage A: depthwise 3x3, stride 2, padding 1 conv (per (n, c) output plane).
# ----------------------------------------------------------------------------
def _dw_conv_kernel(w_ref, b_ref, p00, p01, p10, p11, o_ref, *, ho, wo, ksize):
    c = pl.program_id(1)
    parities = (p00, p01, p10, p11)
    acc = jnp.zeros((ho, wo), jnp.float32) + b_ref[c]
    for kh in range(ksize):
        for kw in range(ksize):
            pr, pc = kh % 2, kw % 2
            r0, c0 = kh // 2, kw // 2
            w = w_ref[c * (ksize * ksize) + kh * ksize + kw]      # SMEM scalar
            xin = parities[pr * 2 + pc][0, 0, r0:r0 + ho, c0:c0 + wo]
            acc = acc + w * xin.astype(jnp.float32)
    o_ref[0, 0] = acc.astype(o_ref.dtype)


def _depthwise_conv_s2(x, dw_w, dw_b, ksize, padding):
    n, cin, h, w = x.shape
    assert h % 2 == 0 and w % 2 == 0, "even spatial dims expected for stride-2"
    ho = (h + 2 * padding - ksize) // 2 + 1
    wo = (w + 2 * padding - ksize) // 2 + 1

    # Zero-pad once, then split into the 4 stride-2 parity grids so the kernel
    # only needs contiguous (unstrided) slices.  # TODO(synk): fold padding/parity
    # into the kernel via strided ref slices to drop this small wrapper pass.
    xp = jnp.pad(x, ((0, 0), (0, 0), (padding, padding), (padding, padding)))
    par = [xp[:, :, pr::2, pc::2] for pr in (0, 1) for pc in (0, 1)]
    hq, wq = par[0].shape[2], par[0].shape[3]

    w_flat = dw_w.reshape(cin, ksize * ksize).reshape(-1).astype(jnp.float32)
    b_flat = dw_b.reshape(cin).astype(jnp.float32)

    smem_spec = pl.BlockSpec(memory_space=pltpu.MemorySpace.SMEM)
    par_spec = pl.BlockSpec((1, 1, hq, wq), lambda nn, cc: (nn, cc, 0, 0))

    kern = functools.partial(_dw_conv_kernel, ho=ho, wo=wo, ksize=ksize)
    z = pl.pallas_call(
        kern,
        out_shape=jax.ShapeDtypeStruct((n, cin, ho, wo), x.dtype),
        grid=(n, cin),
        in_specs=[smem_spec, smem_spec, par_spec, par_spec, par_spec, par_spec],
        out_specs=pl.BlockSpec((1, 1, ho, wo), lambda nn, cc: (nn, cc, 0, 0)),
        compiler_params=pltpu.CompilerParams(
            dimension_semantics=("parallel", "parallel"),
            vmem_limit_bytes=_VMEM_LIMIT,
        ),
    )(w_flat, b_flat, *par)
    return z


# ----------------------------------------------------------------------------
# Stage B: 1x1 conv + BatchNorm(batch stats) + ReLU, two tiled passes.
# ----------------------------------------------------------------------------
def _pw_stats_kernel(w2_ref, z_ref, sum_ref, ssq_ref):
    # Accumulators are resident output blocks (index_map constant along n/hw axes).
    @pl.when((pl.program_id(1) == 0) & (pl.program_id(2) == 0))
    def _init():
        sum_ref[...] = jnp.zeros_like(sum_ref)
        ssq_ref[...] = jnp.zeros_like(ssq_ref)

    y = jnp.dot(w2_ref[...], z_ref[0].astype(jnp.float32),
                preferred_element_type=jnp.float32,
                precision=jax.lax.Precision.HIGHEST)          # (TCO, THW)
    sum_ref[...] += jnp.sum(y, axis=-1, keepdims=True)
    ssq_ref[...] += jnp.sum(y * y, axis=-1, keepdims=True)


def _pw_bn_relu_kernel(w2_ref, scale_ref, shift_ref, z_ref, o_ref):
    y = jnp.dot(w2_ref[...], z_ref[0].astype(jnp.float32),
                preferred_element_type=jnp.float32,
                precision=jax.lax.Precision.HIGHEST)          # (TCO, THW)
    y = y * scale_ref[...] + shift_ref[...]                   # one fma per element
    o_ref[0] = jnp.maximum(y, 0.0).astype(o_ref.dtype)        # ReLU, store in x dtype


def _pointwise_bn_relu(z, pw_w, pw_b, gamma, beta):
    n, cin, ho, wo = z.shape
    cout = pw_w.shape[0]
    hw = ho * wo

    z3 = z.reshape(n, cin, hw)                      # contiguous merge -> free
    w2 = pw_w.reshape(cout, cin).astype(jnp.float32)

    tco = _pick_tile(cout, 8, 256)                  # sublane-quantized channel tile
    thw = _pick_tile(hw, 128, 2048)                 # lane-dense spatial tile
    grid = (cout // tco, n, hw // thw)

    w2_spec = pl.BlockSpec((tco, cin), lambda co, nn, hh: (co, 0))
    z_spec = pl.BlockSpec((1, cin, thw), lambda co, nn, hh: (nn, 0, hh))
    cvec_spec = pl.BlockSpec((tco, 1), lambda co, nn, hh: (co, 0))

    # ---- pass 1: per-channel sum / sum-of-squares of (W2 @ Z) in f32 ----
    s, ssq = pl.pallas_call(
        _pw_stats_kernel,
        out_shape=[jax.ShapeDtypeStruct((cout, 1), jnp.float32)] * 2,
        grid=grid,
        in_specs=[w2_spec, z_spec],
        out_specs=[cvec_spec, cvec_spec],
        compiler_params=pltpu.CompilerParams(
            dimension_semantics=("parallel", "arbitrary", "arbitrary"),
            vmem_limit_bytes=_VMEM_LIMIT,
        ),
    )(w2, z3)

    # ---- finalize: tiny O(Cout) work, precompute fused per-channel scale/shift ----
    cnt = jnp.float32(n * hw)
    b2 = pw_b.reshape(cout, 1).astype(jnp.float32)
    g = gamma.reshape(cout, 1).astype(jnp.float32)
    b = beta.reshape(cout, 1).astype(jnp.float32)
    mean_hat = s / cnt                              # mean of W2@Z (bias excluded)
    mean = mean_hat + b2                            # true batch mean of the 1x1 conv
    var = jnp.maximum(ssq / cnt - mean_hat * mean_hat, 0.0)  # shift-invariant
    inv_std = jax.lax.rsqrt(var + EPS)
    scale = g * inv_std
    shift = b + (b2 - mean) * scale                 # conv bias folds into the shift

    # ---- pass 2: recompute W2 @ Z per tile, fused normalize + ReLU, NCHW output ----
    out3 = pl.pallas_call(
        _pw_bn_relu_kernel,
        out_shape=jax.ShapeDtypeStruct((n, cout, hw), z.dtype),
        grid=grid,
        in_specs=[w2_spec, cvec_spec, cvec_spec, z_spec],
        out_specs=pl.BlockSpec((1, tco, thw), lambda co, nn, hh: (nn, co, hh)),
        compiler_params=pltpu.CompilerParams(
            dimension_semantics=("parallel", "parallel", "arbitrary"),
            vmem_limit_bytes=_VMEM_LIMIT,
        ),
    )(w2, scale, shift, z3)
    return out3.reshape(n, cout, ho, wo)            # split -> free


# ----------------------------------------------------------------------------
# Full module forward
# ----------------------------------------------------------------------------
def dsc_forward(x, dw_w, dw_b, pw_w, pw_b, gamma, beta, *,
                ksize=3, stride=2, padding=1):
    assert ksize == 3 and stride == 2 and padding == 1, "specialized to dsc defaults"
    z = _depthwise_conv_s2(x, dw_w, dw_b, ksize, padding)       # conv1 (depthwise)
    return _pointwise_bn_relu(z, pw_w, pw_b, gamma, beta)       # conv2 + bna


# ----------------------------------------------------------------------------
# Pure-JAX reference
# ----------------------------------------------------------------------------
def _reference(x, dw_w, dw_b, pw_w, pw_b, gamma, beta, *, stride=2, padding=1):
    cin = x.shape[1]
    hp = jax.lax.Precision.HIGHEST
    z = jax.lax.conv_general_dilated(
        x.astype(jnp.float32), dw_w.astype(jnp.float32),
        window_strides=(stride, stride),
        padding=[(padding, padding), (padding, padding)],
        dimension_numbers=("NCHW", "OIHW", "NCHW"),
        feature_group_count=cin, precision=hp)
    z = z + dw_b.reshape(1, -1, 1, 1)
    y = jax.lax.conv_general_dilated(
        z, pw_w.astype(jnp.float32), (1, 1), [(0, 0), (0, 0)],
        dimension_numbers=("NCHW", "OIHW", "NCHW"), precision=hp)
    y = y + pw_b.reshape(1, -1, 1, 1)
    mean = jnp.mean(y, axis=(0, 2, 3), keepdims=True)
    var = jnp.mean((y - mean) ** 2, axis=(0, 2, 3), keepdims=True)
    yn = (y - mean) * jax.lax.rsqrt(var + EPS)
    yn = yn * gamma.reshape(1, -1, 1, 1) + beta.reshape(1, -1, 1, 1)
    return jnp.maximum(yn, 0.0)


if __name__ == "__main__":
    key = jax.random.PRNGKey(0)
    k1, k2, k3, k4, k5 = jax.random.split(key, 5)
    N, CIN, COUT, H, W = 2, 4, 8, 16, 16

    x = jax.random.normal(k1, (N, CIN, H, W), dtype=jnp.float32)
    dw_w = 0.2 * jax.random.normal(k2, (CIN, 1, 3, 3), dtype=jnp.float32)
    dw_b = 0.1 * jax.random.normal(k3, (CIN,), dtype=jnp.float32)
    pw_w = 0.3 * jax.random.normal(k4, (COUT, CIN, 1, 1), dtype=jnp.float32)
    pw_b = 0.1 * jax.random.normal(k5, (COUT,), dtype=jnp.float32)
    gamma = jnp.ones((COUT,), dtype=jnp.float32)   # BatchNorm2d default init
    beta = jnp.zeros((COUT,), dtype=jnp.float32)

    out = dsc_forward(x, dw_w, dw_b, pw_w, pw_b, gamma, beta)
    out = jax.block_until_ready(out)

    ref = _reference(x, dw_w, dw_b, pw_w, pw_b, gamma, beta)
    assert out.shape == (N, COUT, H // 2, W // 2)
    assert jnp.allclose(out, ref, atol=2e-3, rtol=2e-3), "mismatch vs reference"
    print("KERNEL_OK")
</pallas_src>

<mosaic_0001>
module attributes {stable_mosaic.version = 11 : i64} {
  func.func @_dw_conv_kernel(%arg0: i32, %arg1: i32, %arg2: memref<36xf32, #tpu.memory_space<smem>>, %arg3: memref<4xf32, #tpu.memory_space<smem>>, %arg4: memref<1x1x9x9xf32, #tpu.memory_space<vmem>>, %arg5: memref<1x1x9x9xf32, #tpu.memory_space<vmem>>, %arg6: memref<1x1x9x9xf32, #tpu.memory_space<vmem>>, %arg7: memref<1x1x9x9xf32, #tpu.memory_space<vmem>>, %arg8: memref<1x1x8x8xf32, #tpu.memory_space<vmem>>) attributes {dimension_semantics = [#tpu.dimension_semantics<parallel>, #tpu.dimension_semantics<parallel>], iteration_bounds = array<i64: 2, 4>, scalar_prefetch = 0 : i64, scratch_operands = 0 : i64, tpu.core_type = #tpu.core_type<tc>, window_params = [{transform_indices = @transform_0, window_bounds = array<i64: 36>}, {transform_indices = @transform_1, window_bounds = array<i64: 4>}, {transform_indices = @transform_2, window_bounds = array<i64: 1, 1, 9, 9>}, {transform_indices = @transform_3, window_bounds = array<i64: 1, 1, 9, 9>}, {transform_indices = @transform_4, window_bounds = array<i64: 1, 1, 9, 9>}, {transform_indices = @transform_5, window_bounds = array<i64: 1, 1, 9, 9>}, {transform_indices = @transform_6, window_bounds = array<i64: 1, 1, 8, 8>}]} {
    %cst = arith.constant 0.000000e+00 : f32
    %0 = vector.broadcast %cst : f32 to vector<8x8xf32>
    %1 = arith.index_cast %arg1 : i32 to index
    %2 = memref.load %arg3[%1] : memref<4xf32, #tpu.memory_space<smem>>
    %3 = vector.broadcast %2 : f32 to vector<8x8xf32>
    %4 = arith.addf %0, %3 : vector<8x8xf32>
    %c9_i32 = arith.constant 9 : i32
    %5 = arith.muli %arg1, %c9_i32 : i32
    %c0_i32 = arith.constant 0 : i32
    %6 = arith.addi %5, %c0_i32 : i32
    %c0_i32_0 = arith.constant 0 : i32
    %7 = arith.addi %6, %c0_i32_0 : i32
    %8 = arith.index_cast %7 : i32 to index
    %9 = memref.load %arg2[%8] : memref<36xf32, #tpu.memory_space<smem>>
    %c0 = arith.constant 0 : index
    %c0_1 = arith.constant 0 : index
    %c0_2 = arith.constant 0 : index
    %c0_3 = arith.constant 0 : index
    %10 = vector.load %arg4[%c0, %c0_1, %c0_2, %c0_3] : memref<1x1x9x9xf32, #tpu.memory_space<vmem>>, vector<1x1x8x8xf32>
    %11 = vector.shape_cast %10 : vector<1x1x8x8xf32> to vector<8x8xf32>
    %12 = vector.broadcast %9 : f32 to vector<8x8xf32>
    %13 = arith.mulf %12, %11 : vector<8x8xf32>
    %14 = arith.addf %4, %13 : vector<8x8xf32>
    %c9_i32_4 = arith.constant 9 : i32
    %15 = arith.muli %arg1, %c9_i32_4 : i32
    %c0_i32_5 = arith.constant 0 : i32
    %16 = arith.addi %15, %c0_i32_5 : i32
    %c1_i32 = arith.constant 1 : i32
    %17 = arith.addi %16, %c1_i32 : i32
    %18 = arith.index_cast %17 : i32 to index
    %19 = memref.load %arg2[%18] : memref<36xf32, #tpu.memory_space<smem>>
    %c0_6 = arith.constant 0 : index
    %c0_7 = arith.constant 0 : index
    %c0_8 = arith.constant 0 : index
    %c0_9 = arith.constant 0 : index
    %20 = vector.load %arg5[%c0_6, %c0_7, %c0_8, %c0_9] : memref<1x1x9x9xf32, #tpu.memory_space<vmem>>, vector<1x1x8x8xf32>
    %21 = vector.shape_cast %20 : vector<1x1x8x8xf32> to vector<8x8xf32>
    %22 = vector.broadcast %19 : f32 to vector<8x8xf32>
    %23 = arith.mulf %22, %21 : vector<8x8xf32>
    %24 = arith.addf %14, %23 : vector<8x8xf32>
    %c9_i32_10 = arith.constant 9 : i32
    %25 = arith.muli %arg1, %c9_i32_10 : i32
    %c0_i32_11 = arith.constant 0 : i32
    %26 = arith.addi %25, %c0_i32_11 : i32
    %c2_i32 = arith.constant 2 : i32
    %27 = arith.addi %26, %c2_i32 : i32
    %28 = arith.index_cast %27 : i32 to index
    %29 = memref.load %arg2[%28] : memref<36xf32, #tpu.memory_space<smem>>
    %c0_12 = arith.constant 0 : index
    %c0_13 = arith.constant 0 : index
    %c0_14 = arith.constant 0 : index
    %c1 = arith.constant 1 : index
    %30 = vector.load %arg4[%c0_12, %c0_13, %c0_14, %c1] : memref<1x1x9x9xf32, #tpu.memory_space<vmem>>, vector<1x1x8x8xf32>
    %31 = vector.shape_cast %30 : vector<1x1x8x8xf32> to vector<8x8xf32>
    %32 = vector.broadcast %29 : f32 to vector<8x8xf32>
    %33 = arith.mulf %32, %31 : vector<8x8xf32>
    %34 = arith.addf %24, %33 : vector<8x8xf32>
    %c9_i32_15 = arith.constant 9 : i32
    %35 = arith.muli %arg1, %c9_i32_15 : i32
    %c3_i32 = arith.constant 3 : i32
    %36 = arith.addi %35, %c3_i32 : i32
    %c0_i32_16 = arith.constant 0 : i32
    %37 = arith.addi %36, %c0_i32_16 : i32
    %38 = arith.index_cast %37 : i32 to index
    %39 = memref.load %arg2[%38] : memref<36xf32, #tpu.memory_space<smem>>
    %c0_17 = arith.constant 0 : index
    %c0_18 = arith.constant 0 : index
    %c0_19 = arith.constant 0 : index
    %c0_20 = arith.constant 0 : index
    %40 = vector.load %arg6[%c0_17, %c0_18, %c0_19, %c0_20] : memref<1x1x9x9xf32, #tpu.memory_space<vmem>>, vector<1x1x8x8xf32>
    %41 = vector.shape_cast %40 : vector<1x1x8x8xf32> to vector<8x8xf32>
    %42 = vector.broadcast %39 : f32 to vector<8x8xf32>
    %43 = arith.mulf %42, %41 : vector<8x8xf32>
    %44 = arith.addf %34, %43 : vector<8x8xf32>
    %c9_i32_21 = arith.constant 9 : i32
    %45 = arith.muli %arg1, %c9_i32_21 : i32
    %c3_i32_22 = arith.constant 3 : i32
    %46 = arith.addi %45, %c3_i32_22 : i32
    %c1_i32_23 = arith.constant 1 : i32
    %47 = arith.addi %46, %c1_i32_23 : i32
    %48 = arith.index_cast %47 : i32 to index
    %49 = memref.load %arg2[%48] : memref<36xf32, #tpu.memory_space<smem>>
    %c0_24 = arith.constant 0 : index
    %c0_25 = arith.constant 0 : index
    %c0_26 = arith.constant 0 : index
    %c0_27 = arith.constant 0 : index
    %50 = vector.load %arg7[%c0_24, %c0_25, %c0_26, %c0_27] : memref<1x1x9x9xf32, #tpu.memory_space<vmem>>, vector<1x1x8x8xf32>
    %51 = vector.shape_cast %50 : vector<1x1x8x8xf32> to vector<8x8xf32>
    %52 = vector.broadcast %49 : f32 to vector<8x8xf32>
    %53 = arith.mulf %52, %51 : vector<8x8xf32>
    %54 = arith.addf %44, %53 : vector<8x8xf32>
    %c9_i32_28 = arith.constant 9 : i32
    %55 = arith.muli %arg1, %c9_i32_28 : i32
    %c3_i32_29 = arith.constant 3 : i32
    %56 = arith.addi %55, %c3_i32_29 : i32
    %c2_i32_30 = arith.constant 2 : i32
    %57 = arith.addi %56, %c2_i32_30 : i32
    %58 = arith.index_cast %57 : i32 to index
    %59 = memref.load %arg2[%58] : memref<36xf32, #tpu.memory_space<smem>>
    %c0_31 = arith.constant 0 : index
    %c0_32 = arith.constant 0 : index
    %c0_33 = arith.constant 0 : index
    %c1_34 = arith.constant 1 : index
    %60 = vector.load %arg6[%c0_31, %c0_32, %c0_33, %c1_34] : memref<1x1x9x9xf32, #tpu.memory_space<vmem>>, vector<1x1x8x8xf32>
    %61 = vector.shape_cast %60 : vector<1x1x8x8xf32> to vector<8x8xf32>
    %62 = vector.broadcast %59 : f32 to vector<8x8xf32>
    %63 = arith.mulf %62, %61 : vector<8x8xf32>
    %64 = arith.addf %54, %63 : vector<8x8xf32>
    %c9_i32_35 = arith.constant 9 : i32
    %65 = arith.muli %arg1, %c9_i32_35 : i32
    %c6_i32 = arith.constant 6 : i32
    %66 = arith.addi %65, %c6_i32 : i32
    %c0_i32_36 = arith.constant 0 : i32
    %67 = arith.addi %66, %c0_i32_36 : i32
    %68 = arith.index_cast %67 : i32 to index
    %69 = memref.load %arg2[%68] : memref<36xf32, #tpu.memory_space<smem>>
    %c0_37 = arith.constant 0 : index
    %c0_38 = arith.constant 0 : index
    %c1_39 = arith.constant 1 : index
    %c0_40 = arith.constant 0 : index
    %70 = vector.load %arg4[%c0_37, %c0_38, %c1_39, %c0_40] : memref<1x1x9x9xf32, #tpu.memory_space<vmem>>, vector<1x1x8x8xf32>
    %71 = vector.shape_cast %70 : vector<1x1x8x8xf32> to vector<8x8xf32>
    %72 = vector.broadcast %69 : f32 to vector<8x8xf32>
    %73 = arith.mulf %72, %71 : vector<8x8xf32>
    %74 = arith.addf %64, %73 : vector<8x8xf32>
    %c9_i32_41 = arith.constant 9 : i32
    %75 = arith.muli %arg1, %c9_i32_41 : i32
    %c6_i32_42 = arith.constant 6 : i32
    %76 = arith.addi %75, %c6_i32_42 : i32
    %c1_i32_43 = arith.constant 1 : i32
    %77 = arith.addi %76, %c1_i32_43 : i32
    %78 = arith.index_cast %77 : i32 to index
    %79 = memref.load %arg2[%78] : memref<36xf32, #tpu.memory_space<smem>>
    %c0_44 = arith.constant 0 : index
    %c0_45 = arith.constant 0 : index
    %c1_46 = arith.constant 1 : index
    %c0_47 = arith.constant 0 : index
    %80 = vector.load %arg5[%c0_44, %c0_45, %c1_46, %c0_47] : memref<1x1x9x9xf32, #tpu.memory_space<vmem>>, vector<1x1x8x8xf32>
    %81 = vector.shape_cast %80 : vector<1x1x8x8xf32> to vector<8x8xf32>
    %82 = vector.broadcast %79 : f32 to vector<8x8xf32>
    %83 = arith.mulf %82, %81 : vector<8x8xf32>
    %84 = arith.addf %74, %83 : vector<8x8xf32>
    %c9_i32_48 = arith.constant 9 : i32
    %85 = arith.muli %arg1, %c9_i32_48 : i32
    %c6_i32_49 = arith.constant 6 : i32
    %86 = arith.addi %85, %c6_i32_49 : i32
    %c2_i32_50 = arith.constant 2 : i32
    %87 = arith.addi %86, %c2_i32_50 : i32
    %88 = arith.index_cast %87 : i32 to index
    %89 = memref.load %arg2[%88] : memref<36xf32, #tpu.memory_space<smem>>
    %c0_51 = arith.constant 0 : index
    %c0_52 = arith.constant 0 : index
    %c1_53 = arith.constant 1 : index
    %c1_54 = arith.constant 1 : index
    %90 = vector.load %arg4[%c0_51, %c0_52, %c1_53, %c1_54] : memref<1x1x9x9xf32, #tpu.memory_space<vmem>>, vector<1x1x8x8xf32>
    %91 = vector.shape_cast %90 : vector<1x1x8x8xf32> to vector<8x8xf32>
    %92 = vector.broadcast %89 : f32 to vector<8x8xf32>
    %93 = arith.mulf %92, %91 : vector<8x8xf32>
    %94 = arith.addf %84, %93 : vector<8x8xf32>
    %c0_55 = arith.constant 0 : index
    %c0_56 = arith.constant 0 : index
    %c0_57 = arith.constant 0 : index
    %c0_58 = arith.constant 0 : index
    %95 = vector.load %arg8[%c0_55, %c0_56, %c0_57, %c0_58] : memref<1x1x8x8xf32, #tpu.memory_space<vmem>>, vector<1x1x8x8xf32>
    %96 = vector.shape_cast %95 : vector<1x1x8x8xf32> to vector<8x8xf32>
    %97 = vector.shape_cast %94 : vector<8x8xf32> to vector<1x1x8x8xf32>
    tpu.vector_store %arg8[%c0_55, %c0_56, %c0_57, %c0_58], %97 {strides = array<i32>} : memref<1x1x8x8xf32, #tpu.memory_space<vmem>>, vector<1x1x8x8xf32>,
    return
  }
  func.func @transform_0(%arg0: i32, %arg1: i32) -> i32 {
    %c0_i32 = arith.constant 0 : i32
    %c0_i32_0 = arith.constant 0 : i32
    return %c0_i32 : i32
  }
  func.func @transform_1(%arg0: i32, %arg1: i32) -> i32 {
    %c0_i32 = arith.constant 0 : i32
    %c0_i32_0 = arith.constant 0 : i32
    return %c0_i32 : i32
  }
  func.func @transform_2(%arg0: i32, %arg1: i32) -> (i32, i32, i32, i32) {
    %c0_i32 = arith.constant 0 : i32
    %c0_i32_0 = arith.constant 0 : i32
    %c0_i32_1 = arith.constant 0 : i32
    return %arg0, %arg1, %c0_i32, %c0_i32_0 : i32, i32, i32, i32
  }
  func.func @transform_3(%arg0: i32, %arg1: i32) -> (i32, i32, i32, i32) {
    %c0_i32 = arith.constant 0 : i32
    %c0_i32_0 = arith.constant 0 : i32
    %c0_i32_1 = arith.constant 0 : i32
    return %arg0, %arg1, %c0_i32, %c0_i32_0 : i32, i32, i32, i32
  }
  func.func @transform_4(%arg0: i32, %arg1: i32) -> (i32, i32, i32, i32) {
    %c0_i32 = arith.constant 0 : i32
    %c0_i32_0 = arith.constant 0 : i32
    %c0_i32_1 = arith.constant 0 : i32
    return %arg0, %arg1, %c0_i32, %c0_i32_0 : i32, i32, i32, i32
  }
  func.func @transform_5(%arg0: i32, %arg1: i32) -> (i32, i32, i32, i32) {
    %c0_i32 = arith.constant 0 : i32
    %c0_i32_0 = arith.constant 0 : i32
    %c0_i32_1 = arith.constant 0 : i32
    return %arg0, %arg1, %c0_i32, %c0_i32_0 : i32, i32, i32, i32
  }
  func.func @transform_6(%arg0: i32, %arg1: i32) -> (i32, i32, i32, i32) {
    %c0_i32 = arith.constant 0 : i32
    %c0_i32_0 = arith.constant 0 : i32
    %c0_i32_1 = arith.constant 0 : i32
    return %arg0, %arg1, %c0_i32, %c0_i32_0 : i32, i32, i32, i32
  }
}

</mosaic_0001>

<llo_original>
// kernel: tpu_custom_call.1
$region0: #{tpu_custom_call.1}
  #allocation0 [shape = 'u32[]', space=smem, size = 0x4, offset = 0x4, fixed_abs, tag = 'smem constant byte address 0x4 - core index']
  #allocation1 [shape = 'u32[72,128]{1,0:T(1,128)}', space=vmem, size = 0x9000, scoped, tag = 'internal scratch']
  %s0 = inlined_call_operand.vmem [shape: f32[36], index: 0, kind: input, shape index: {}]
  %s1 = inlined_call_operand.vmem [shape: f32[4], index: 1, kind: input, shape index: {}]
  %s2 = inlined_call_operand.vmem [shape: f32[2,4,9,9], index: 2, kind: input, shape index: {}]
  %s3 = inlined_call_operand.vmem [shape: f32[2,4,9,9], index: 3, kind: input, shape index: {}]
  %s4 = inlined_call_operand.vmem [shape: f32[2,4,9,9], index: 4, kind: input, shape index: {}]
  %s5 = inlined_call_operand.vmem [shape: f32[2,4,9,9], index: 5, kind: input, shape index: {}]
  %s6 = inlined_call_operand.hbm [shape: f32[2,4,8,8], index: 6, kind: output, shape index: {}]
  %s7 = sld [smem:[#allocation0]]
  $region65: #{tpu_custom_call.1} parent=0
    _
  %s9 = ssub.s32 1, %s7
  %s10 = scalar_select 0, %s9, %s7
  $region1: #{tpu_custom_call.1} parent=0
    #allocation2 [shape = 'u8[512]{0}', space=smem, size = 0x200, scoped, tag = 'input window, operand 0, single buffered']
    #allocation3 [shape = 's32[2]{0}', space=sflag, size = 0x8, scoped, tag = 'scoped memory for tpu_custom_call.1']
    #allocation4 [shape = 's32[2]{0}', space=sflag, size = 0x8, scoped, tag = 'scoped memory for tpu_custom_call.1']
    #allocation5 [shape = 'u8[512]{0}', space=smem, size = 0x200, scoped, tag = 'input window, operand 1, single buffered']
    #allocation6 [shape = 's32[1]{0}', space=sflag, size = 0x4, scoped, tag = 'scoped memory for tpu_custom_call.1']
    #allocation7 [shape = 'u8[8192]{0}', space=vmem, size = 0x2000, scoped, tag = 'output window, operand 0']
    %11 = vsyncpa [#allocation4], 0
    %12 = vsyncpa [#allocation6], 0
    %13 = vsyncpa [#allocation3], 0
    %s14 = scalar_lea.sflag [#allocation3], 1
    %15 = vsyncpa %s14, 0
    loop: start=0, step=1, limit=10
    $region2: #{tpu_custom_call.1} parent=1 // loop_pre_header
      _
    $region3: #{tpu_custom_call.1} parent=1 // loop_header
      %s17 = sphi 0, %s21
      %p18 = scmp.ge.s32.totalorder %s17, 10
      %s24 = sphi 0, %s36
      %s25 = sphi 0, %s32
      %s26 = sphi 0, %s24
      %s27 = sphi 0, %s25
      %s28 = sphi 0, %s26
      %s29 = sphi 0, %s27
      %s37 = sphi 0, %s37
      %s39 = sphi 0, %s37
      %s40 = sphi 0, %s39
      %s54 = sphi 0, %s40
      %s58 = sphi 0, %s58
      %s60 = sphi 0, %s58
      %s61 = sphi 0, %s60
      %s75 = sphi 0, %s61
      %s83 = sphi 0, %s85
      %s86 = sphi 0, %s83
      %s87 = sphi 0, %s86
      %s103 = sphi 0, %s87
      %s111 = sphi 0, %s113
      %s114 = sphi 0, %s111
      %s115 = sphi 0, %s114
      %s131 = sphi 0, %s115
      %s139 = sphi 0, %s141
      %s142 = sphi 0, %s139
      %s143 = sphi 0, %s142
      %s159 = sphi 0, %s143
      %s167 = sphi 0, %s169
      %s170 = sphi 0, %s167
      %s171 = sphi 0, %s170
      %s187 = sphi 0, %s171
      %s195 = sphi 0, %s197
      %s198 = sphi 0, %s195
      %s199 = sphi 0, %s198
      %s215 = sphi 0, %s199
    $region4: #{tpu_custom_call.1} parent=1 // loop_header_branch
      %20 = sbr.rel (%p18) target = $region8
    $region5: #{tpu_custom_call.1} parent=1 // loop_body
      %s22 = ssub.s32 %s17, 1
      %s23 = ssub.s32 %s17, 2
      %s30 = sadd.s32 1, %s25
      %p31 = scmp.ge.s32.totalorder %s30, 4
      %s32 = scalar_select %p31, 0, %s30
      %s33 = sadd.s32 1, %s24
      %s34 = scalar_select %p31, %s33, %s24
      %p35 = scmp.ge.s32.totalorder %s34, 2
      %s36 = scalar_select %p35, 0, %s34
      %s38 = sadd.s32 %s37, 1
      %p41 = scmp.eq.s32.totalorder %s17, 7
      %p42 = scmp.ne.s32.totalorder %s37, %s39
      %p43 = scmp.eq.s32.totalorder %s17, 0
      %p44 = por %p42, %p43
      %p45 = scmp.ne.s32.totalorder %s37, %s39
      %p46 = scmp.eq.s32.totalorder %s22, 7
      %p47 = por %p45, %p46
      %p48 = scmp.ne.s32.totalorder %s39, %s40
      %p49 = scmp.eq.s32.totalorder %s22, 0
      %p50 = por %p48, %p49
      %p51 = scmp.ne.s32.totalorder %s39, %s40
      %p52 = scmp.eq.s32.totalorder %s23, 7
      %p53 = por %p51, %p52
      %p55 = scmp.ne.s32.totalorder %s40, %s54
      %p56 = scmp.eq.s32.totalorder %s23, 0
      %p57 = por %p55, %p56
      %s59 = sadd.s32 %s58, 1
      %p62 = scmp.eq.s32.totalorder %s17, 7
      %p63 = scmp.ne.s32.totalorder %s58, %s60
      %p64 = scmp.eq.s32.totalorder %s17, 0
      %p65 = por %p63, %p64
      %p66 = scmp.ne.s32.totalorder %s58, %s60
      %p67 = scmp.eq.s32.totalorder %s22, 7
      %p68 = por %p66, %p67
      %p69 = scmp.ne.s32.totalorder %s60, %s61
      %p70 = scmp.eq.s32.totalorder %s22, 0
      %p71 = por %p69, %p70
      %p72 = scmp.ne.s32.totalorder %s60, %s61
      %p73 = scmp.eq.s32.totalorder %s23, 7
      %p74 = por %p72, %p73
      %p76 = scmp.ne.s32.totalorder %s61, %s75
      %p77 = scmp.eq.s32.totalorder %s23, 0
      %p78 = por %p76, %p77
      %s79 = ssub.s32 %s24, %s36
      %s80 = ssub.s32 %s25, %s32
      %s81 = sor.u32 %s79, %s80
      %p82 = scmp.eq.s32.totalorder %s81, 0
      %s84 = sadd.s32 %s83, 1
      %s85 = scalar_select %p82, %s83, %s84
      %p88 = pneg %p82
      %p89 = scmp.eq.s32.totalorder %s17, 7
      %p90 = por %p88, %p89
      %p91 = scmp.ne.s32.totalorder %s83, %s86
      %p92 = scmp.eq.s32.totalorder %s17, 0
      %p93 = por %p91, %p92
      %p94 = scmp.ne.s32.totalorder %s83, %s86
      %p95 = scmp.eq.s32.totalorder %s22, 7
      %p96 = por %p94, %p95
      %p97 = scmp.ne.s32.totalorder %s86, %s87
      %p98 = scmp.eq.s32.totalorder %s22, 0
      %p99 = por %p97, %p98
      %p100 = scmp.ne.s32.totalorder %s86, %s87
      %p101 = scmp.eq.s32.totalorder %s23, 7
      %p102 = por %p100, %p101
      %p104 = scmp.ne.s32.totalorder %s87, %s103
      %p105 = scmp.eq.s32.totalorder %s23, 0
      %p106 = por %p104, %p105
      %s107 = ssub.s32 %s24, %s36
      %s108 = ssub.s32 %s25, %s32
      %s109 = sor.u32 %s107, %s108
      %p110 = scmp.eq.s32.totalorder %s109, 0
      %s112 = sadd.s32 %s111, 1
      %s113 = scalar_select %p110, %s111, %s112
      %p116 = pneg %p110
      %p117 = scmp.eq.s32.totalorder %s17, 7
      %p118 = por %p116, %p117
      %p119 = scmp.ne.s32.totalorder %s111, %s114
      %p120 = scmp.eq.s32.totalorder %s17, 0
      %p121 = por %p119, %p120
      %p122 = scmp.ne.s32.totalorder %s111, %s114
      %p123 = scmp.eq.s32.totalorder %s22, 7
      %p124 = por %p122, %p123
      %p125 = scmp.ne.s32.totalorder %s114, %s115
      %p126 = scmp.eq.s32.totalorder %s22, 0
      %p127 = por %p125, %p126
      %p128 = scmp.ne.s32.totalorder %s114, %s115
      %p129 = scmp.eq.s32.totalorder %s23, 7
      %p130 = por %p128, %p129
      %p132 = scmp.ne.s32.totalorder %s115, %s131
      %p133 = scmp.eq.s32.totalorder %s23, 0
      %p134 = por %p132, %p133
      %s135 = ssub.s32 %s24, %s36
      %s136 = ssub.s32 %s25, %s32
      %s137 = sor.u32 %s135, %s136
      %p138 = scmp.eq.s32.totalorder %s137, 0
      %s140 = sadd.s32 %s139, 1
      %s141 = scalar_select %p138, %s139, %s140
      %p144 = pneg %p138
      %p145 = scmp.eq.s32.totalorder %s17, 7
      %p146 = por %p144, %p145
      %p147 = scmp.ne.s32.totalorder %s139, %s142
      %p148 = scmp.eq.s32.totalorder %s17, 0
      %p149 = por %p147, %p148
      %p150 = scmp.ne.s32.totalorder %s139, %s142
      %p151 = scmp.eq.s32.totalorder %s22, 7
      %p152 = por %p150, %p151
      %p153 = scmp.ne.s32.totalorder %s142, %s143
      %p154 = scmp.eq.s32.totalorder %s22, 0
      %p155 = por %p153, %p154
      %p156 = scmp.ne.s32.totalorder %s142, %s143
      %p157 = scmp.eq.s32.totalorder %s23, 7
      %p158 = por %p156, %p157
      %p160 = scmp.ne.s32.totalorder %s143, %s159
      %p161 = scmp.eq.s32.totalorder %s23, 0
      %p162 = por %p160, %p161
      %s163 = ssub.s32 %s24, %s36
      %s164 = ssub.s32 %s25, %s32
      %s165 = sor.u32 %s163, %s164
      %p166 = scmp.eq.s32.totalorder %s165, 0
      %s168 = sadd.s32 %s167, 1
      %s169 = scalar_select %p166, %s167, %s168
      %p172 = pneg %p166
      %p173 = scmp.eq.s32.totalorder %s17, 7
      %p174 = por %p172, %p173
      %p175 = scmp.ne.s32.totalorder %s167, %s170
      %p176 = scmp.eq.s32.totalorder %s17, 0
      %p177 = por %p175, %p176
      %p178 = scmp.ne.s32.totalorder %s167, %s170
      %p179 = scmp.eq.s32.totalorder %s22, 7
      %p180 = por %p178, %p179
      %p181 = scmp.ne.s32.totalorder %s170, %s171
      %p182 = scmp.eq.s32.totalorder %s22, 0
      %p183 = por %p181, %p182
      %p184 = scmp.ne.s32.totalorder %s170, %s171
      %p185 = scmp.eq.s32.totalorder %s23, 7
      %p186 = por %p184, %p185
      %p188 = scmp.ne.s32.totalorder %s171, %s187
      %p189 = scmp.eq.s32.totalorder %s23, 0
      %p190 = por %p188, %p189
      %s191 = ssub.s32 %s24, %s36
      %s192 = ssub.s32 %s25, %s32
      %s193 = sor.u32 %s191, %s192
      %p194 = scmp.eq.s32.totalorder %s193, 0
      %s196 = sadd.s32 %s195, 1
      %s197 = scalar_select %p194, %s195, %s196
      %p200 = pneg %p194
      %p201 = scmp.eq.s32.totalorder %s17, 7
      %p202 = por %p200, %p201
      %p203 = scmp.ne.s32.totalorder %s195, %s198
      %p204 = scmp.eq.s32.totalorder %s17, 0
      %p205 = por %p203, %p204
      %p206 = scmp.ne.s32.totalorder %s195, %s198
      %p207 = scmp.eq.s32.totalorder %s22, 7
      %p208 = por %p206, %p207
      %p209 = scmp.ne.s32.totalorder %s198, %s199
      %p210 = scmp.eq.s32.totalorder %s22, 0
      %p211 = por %p209, %p210
      %p212 = scmp.ne.s32.totalorder %s198, %s199
      %p213 = scmp.eq.s32.totalorder %s23, 7
      %p214 = por %p212, %p213
      %p216 = scmp.ne.s32.totalorder %s199, %s215
      %p217 = scmp.eq.s32.totalorder %s23, 0
      %p218 = por %p216, %p217
      %p219 = scmp.le.s32.totalorder 1, %s17
      %p220 = scmp.lt.s32.totalorder %s17, 9
      %p221 = pnand %p219, %p220
      %p222 = pneg %p221
      // Predicated region
      $region9: #{tpu_custom_call.1} parent=5 // pred_check
        _
      $region10: #{tpu_custom_call.1} parent=5 // pred_check_branch
        %224 = sbr.rel (%p221) target = $region12
      $region11: #{tpu_custom_call.1} parent=5 // pred_region
        %s225 = ssub.s32 %s17, 1
        // Predicated region
        $region13: #{tpu_custom_call.1} parent=11 // pred_check
          %p226 = pneg %p50
        $region14: #{tpu_custom_call.1} parent=11 // pred_check_branch
          %228 = sbr.rel (%p226) target = $region16
        $region15: #{tpu_custom_call.1} parent=11 // pred_region
          %230 = vsyncadd [#allocation4], 0
          %s232 = sshll.u32 %s0, 4
          %s233 = int_to_ptr.vmem [resolvable:$true] %s232
          %235 = dma.vmem_to_smem %s233, 16, [#allocation2], [#allocation4]
        $region16: #{tpu_custom_call.1} parent=11 // pred_fallthru
          _
        // Predicated region
        $region17: #{tpu_custom_call.1} parent=11 // pred_check
          %p236 = pneg %p71
        $region18: #{tpu_custom_call.1} parent=11 // pred_check_branch
          %238 = sbr.rel (%p236) target = $region20
        $region19: #{tpu_custom_call.1} parent=11 // pred_region
          %240 = vsyncadd [#allocation6], 0
          %s242 = sshll.u32 %s1, 4
          %s243 = int_to_ptr.vmem [resolvable:$true] %s242
          %245 = dma.vmem_to_smem %s243, 16, [#allocation5], [#allocation6]
        $region20: #{tpu_custom_call.1} parent=11 // pred_fallthru
          _
      $region12: #{tpu_custom_call.1} parent=5 // pred_fallthru
        _
      %p246 = scmp.lt.s32.totalorder %s17, 8
      // Predicated region
      $region21: #{tpu_custom_call.1} parent=5 // pred_check
        %p247 = pneg %p246
      $region22: #{tpu_custom_call.1} parent=5 // pred_check_branch
        %249 = sbr.rel (%p247) target = $region24
      $region23: #{tpu_custom_call.1} parent=5 // pred_region
        // Predicated region
        $region25: #{tpu_custom_call.1} parent=23 // pred_check
          %p250 = pneg %p93
        $region26: #{tpu_custom_call.1} parent=23 // pred_check_branch
          %252 = sbr.rel (%p250) target = $region28
        $region27: #{tpu_custom_call.1} parent=23 // pred_region
          %p253 = scmp.lt.s32.totalorder %s24, 1
          %s254 = scalar_select %p253, %s24, 1
          %p255 = scmp.lt.s32.totalorder %s25, 3
          %s256 = scalar_select %p255, %s25, 3
          %s257 = smul.addr %s256, 2
          %s258 = smul.addr %s254, 8
          %s259 = sadd.s32 %s257, %s258
          %s260 = smul.addr %s259, 8
          %s261 = scalar_lea.vmem %s2, %s260
        $region28: #{tpu_custom_call.1} parent=23 // pred_fallthru
          _
        // Predicated region
        $region29: #{tpu_custom_call.1} parent=23 // pred_check
          %p262 = pneg %p121
        $region30: #{tpu_custom_call.1} parent=23 // pred_check_branch
          %264 = sbr.rel (%p262) target = $region32
        $region31: #{tpu_custom_call.1} parent=23 // pred_region
          %p265 = scmp.lt.s32.totalorder %s24, 1
          %s266 = scalar_select %p265, %s24, 1
          %p267 = scmp.lt.s32.totalorder %s25, 3
          %s268 = scalar_select %p267, %s25, 3
          %s269 = smul.addr %s268, 2
          %s270 = smul.addr %s266, 8
          %s271 = sadd.s32 %s269, %s270
          %s272 = smul.addr %s271, 8
          %s273 = scalar_lea.vmem %s3, %s272
        $region32: #{tpu_custom_call.1} parent=23 // pred_fallthru
          _
        // Predicated region
        $region33: #{tpu_custom_call.1} parent=23 // pred_check
          %p274 = pneg %p149
        $region34: #{tpu_custom_call.1} parent=23 // pred_check_branch
          %276 = sbr.rel (%p274) target = $region36
        $region35: #{tpu_custom_call.1} parent=23 // pred_region
          %p277 = scmp.lt.s32.totalorder %s24, 1
          %s278 = scalar_select %p277, %s24, 1
          %p279 = scmp.lt.s32.totalorder %s25, 3
          %s280 = scalar_select %p279, %s25, 3
          %s281 = smul.addr %s280, 2
          %s282 = smul.addr %s278, 8
          %s283 = sadd.s32 %s281, %s282
          %s284 = smul.addr %s283, 8
          %s285 = scalar_lea.vmem %s4, %s284
        $region36: #{tpu_custom_call.1} parent=23 // pred_fallthru
          _
        // Predicated region
        $region37: #{tpu_custom_call.1} parent=23 // pred_check
          %p286 = pneg %p177
        $region38: #{tpu_custom_call.1} parent=23 // pred_check_branch
          %288 = sbr.rel (%p286) target = $region40
        $region39: #{tpu_custom_call.1} parent=23 // pred_region
          %p289 = scmp.lt.s32.totalorder %s24, 1
          %s290 = scalar_select %p289, %s24, 1
          %p291 = scmp.lt.s32.totalorder %s25, 3
          %s292 = scalar_select %p291, %s25, 3
          %s293 = smul.addr %s292, 2
          %s294 = smul.addr %s290, 8
          %s295 = sadd.s32 %s293, %s294
          %s296 = smul.addr %s295, 8
          %s297 = scalar_lea.vmem %s5, %s296
        $region40: #{tpu_custom_call.1} parent=23 // pred_fallthru
          _
      $region24: #{tpu_custom_call.1} parent=5 // pred_fallthru
        _
      %p298 = scmp.le.s32.totalorder 1, %s17
      %p299 = scmp.lt.s32.totalorder %s17, 9
      %p300 = pnand %p298, %p299
      %p301 = pneg %p300
      // Predicated region
      $region41: #{tpu_custom_call.1} parent=5 // pred_check
        _
      $region42: #{tpu_custom_call.1} parent=5 // pred_check_branch
        %303 = sbr.rel (%p300) target = $region44
      $region43: #{tpu_custom_call.1} parent=5 // pred_region
        %s304 = ssub.s32 %s17, 1
        // Predicated region
        $region45: #{tpu_custom_call.1} parent=43 // pred_check
          %p305 = pneg %p50
        $region46: #{tpu_custom_call.1} parent=43 // pred_check_branch
          %307 = sbr.rel (%p305) target = $region48
        $region47: #{tpu_custom_call.1} parent=43 // pred_region
          %309 = dma.done [#allocation4], 16
        $region48: #{tpu_custom_call.1} parent=43 // pred_fallthru
          _
        // Predicated region
        $region49: #{tpu_custom_call.1} parent=43 // pred_check
          %p310 = pneg %p71
        $region50: #{tpu_custom_call.1} parent=43 // pred_check_branch
          %312 = sbr.rel (%p310) target = $region52
        $region51: #{tpu_custom_call.1} parent=43 // pred_region
          %314 = dma.done [#allocation6], 16
        $region52: #{tpu_custom_call.1} parent=43 // pred_fallthru
          _
        %315 = sfence
        %p316 = pneg %p50
        %p317 = pneg %p47
        %p318 = pneg %p71
        %p319 = pneg %p68
        %p320 = scmp.lt.s32.totalorder %s26, 1
        %s321 = scalar_select %p320, %s26, 1
        %p322 = scmp.lt.s32.totalorder %s27, 3
        %s323 = scalar_select %p322, %s27, 3
        %s324 = smul.addr %s323, 2
        %s325 = smul.addr %s321, 8
        %s326 = sadd.s32 %s324, %s325
        %s327 = smul.addr %s326, 8
        %s328 = scalar_lea.vmem %s2, %s327
        %p329 = pneg %p99
        %p330 = pneg %p96
        %p331 = scmp.lt.s32.totalorder %s26, 1
        %s332 = scalar_select %p331, %s26, 1
        %p333 = scmp.lt.s32.totalorder %s27, 3
        %s334 = scalar_select %p333, %s27, 3
        %s335 = smul.addr %s334, 2
        %s336 = smul.addr %s332, 8
        %s337 = sadd.s32 %s335, %s336
        %s338 = smul.addr %s337, 8
        %s339 = scalar_lea.vmem %s3, %s338
        %p340 = pneg %p127
        %p341 = pneg %p124
        %p342 = scmp.lt.s32.totalorder %s26, 1
        %s343 = scalar_select %p342, %s26, 1
        %p344 = scmp.lt.s32.totalorder %s27, 3
        %s345 = scalar_select %p344, %s27, 3
        %s346 = smul.addr %s345, 2
        %s347 = smul.addr %s343, 8
        %s348 = sadd.s32 %s346, %s347
        %s349 = smul.addr %s348, 8
        %s350 = scalar_lea.vmem %s4, %s349
        %p351 = pneg %p155
        %p352 = pneg %p152
        %p353 = scmp.lt.s32.totalorder %s26, 1
        %s354 = scalar_select %p353, %s26, 1
        %p355 = scmp.lt.s32.totalorder %s27, 3
        %s356 = scalar_select %p355, %s27, 3
        %s357 = smul.addr %s356, 2
        %s358 = smul.addr %s354, 8
        %s359 = sadd.s32 %s357, %s358
        %s360 = smul.addr %s359, 8
        %s361 = scalar_lea.vmem %s5, %s360
        %p362 = pneg %p183
        %p363 = pneg %p180
        %p364 = pneg %p211
        %p365 = pneg %p208
        %s366 = sand.u32 %s198, 1
        %s367 = scalar_lea.sflag [#allocation3], %s366
        %s368 = sand.u32 %s198, 1
        %s369 = smul.addr %s368, 8
        %s370 = scalar_lea.vmem [#allocation7], %s369
        %p371 = scmp.lt.s32.totalorder %s26, 1
        %s372 = scalar_select %p371, %s26, 1
        %p373 = scmp.lt.s32.totalorder %s27, 3
        %s374 = scalar_select %p373, %s27, 3
        %s375 = smul.addr %s374, 2
        %s376 = smul.addr %s372, 8
        %s377 = sadd.s32 %s375, %s376
        %s378 = smul.addr %s377, 8
        %s379 = scalar_lea.vmem %s2, %s378
        %p380 = scmp.lt.s32.totalorder %s26, 1
        %s381 = scalar_select %p380, %s26, 1
        %p382 = scmp.lt.s32.totalorder %s27, 3
        %s383 = scalar_select %p382, %s27, 3
        %s384 = smul.addr %s383, 2
        %s385 = smul.addr %s381, 8
        %s386 = sadd.s32 %s384, %s385
        %s387 = smul.addr %s386, 8
        %s388 = scalar_lea.vmem %s3, %s387
        %p389 = scmp.lt.s32.totalorder %s26, 1
        %s390 = scalar_select %p389, %s26, 1
        %p391 = scmp.lt.s32.totalorder %s27, 3
        %s392 = scalar_select %p391, %s27, 3
        %s393 = smul.addr %s392, 2
        %s394 = smul.addr %s390, 8
        %s395 = sadd.s32 %s393, %s394
        %s396 = smul.addr %s395, 8
        %s397 = scalar_lea.vmem %s4, %s396
        %p398 = scmp.lt.s32.totalorder %s26, 1
        %s399 = scalar_select %p398, %s26, 1
        %p400 = scmp.lt.s32.totalorder %s27, 3
        %s401 = scalar_select %p400, %s27, 3
        %s402 = smul.addr %s401, 2
        %s403 = smul.addr %s399, 8
        %s404 = sadd.s32 %s402, %s403
        %s405 = smul.addr %s404, 8
        %s406 = scalar_lea.vmem %s5, %s405
        %s407 = sld [smem:[#allocation5 + %s27]]
        %v408 = vstv %s407
        %v409 = vadd.f32 %v408, 0.0
        %s410 = smul.u32 %s27, 9
        %s411 = sld [smem:[#allocation2 + %s410]]
        %v412 = vld [vmem:[%s379] sm:$0xff]
        %v413 = vstv %s411
        %v414 = vmul.f32 %v413, %v412
        %v415 = vadd.f32 %v409, %v414
        %s416 = sadd.s32 %s410, 1
        %s417 = sld [smem:[#allocation2 + %s416]]
        %v418 = vld [vmem:[%s388] sm:$0xff]
        %v419 = vstv %s417
        %v420 = vmul.f32 %v419, %v418
        %v421 = vadd.f32 %v415, %v420
        %s422 = sadd.s32 %s410, 2
        %s423 = sld [smem:[#allocation2 + %s422]]
        %v424 = vstv %s423
        %v425 = vmul.f32 %v424, %v412
        %427 = vrot.lane.b32.xlu0 %v425, 127
        %v428 = vpop.permute.xlu0 %427
        %v430 = vadd.f32 %v421, %v428
        %s431 = sadd.s32 %s410, 3
        %s432 = sld [smem:[#allocation2 + %s431]]
        %v433 = vld [vmem:[%s397] sm:$0xff]
        %v434 = vstv %s432
        %v435 = vmul.f32 %v434, %v433
        %v436 = vadd.f32 %v430, %v435
        %s437 = sadd.s32 %s410, 4
        %s438 = sld [smem:[#allocation2 + %s437]]
        %v439 = vld [vmem:[%s406] sm:$0xff]
        %v440 = vstv %s438
        %v441 = vmul.f32 %v440, %v439
        %v442 = vadd.f32 %v436, %v441
        %s443 = sadd.s32 %s410, 5
        %s444 = sld [smem:[#allocation2 + %s443]]
        %v445 = vstv %s444
        %v446 = vmul.f32 %v445, %v433
        %448 = vrot.lane.b32.xlu0 %v446, 127
        %v449 = vpop.permute.xlu0 %448
        %v451 = vadd.f32 %v442, %v449
        %s452 = sadd.s32 %s410, 6
        %s453 = sld [smem:[#allocation2 + %s452]]
        %v454 = vld [vmem:[%s379 + $0x1] sm:$0xff]
        %v455 = vstv %s453
        %v456 = vmul.f32 %v455, %v454
        %v457 = vadd.f32 %v451, %v456
        %s458 = sadd.s32 %s410, 7
        %s459 = sld [smem:[#allocation2 + %s458]]
        %v460 = vld [vmem:[%s388 + $0x1] sm:$0xff]
        %v461 = vstv %s459
        %v462 = vmul.f32 %v461, %v460
        %v463 = vadd.f32 %v457, %v462
        %s464 = sadd.s32 %s410, 8
        %s465 = sld [smem:[#allocation2 + %s464]]
        %v466 = vstv %s465
        %v467 = vmul.f32 %v466, %v454
        %469 = vrot.lane.b32.xlu0 %v467, 127
        %v470 = vpop.permute.xlu0 %469
        %v472 = vadd.f32 %v463, %v470
        %vm473 = vcmask 64512
        %474 = vst.msk [vmem:[%s370] sm:$0xff] %vm473, %v472
        %s475 = sand.u32 %s198, 1
        %s476 = scalar_lea.sflag [#allocation3], %s475
        %s477 = sand.u32 %s198, 1
        %s478 = smul.addr %s477, 8
        %s479 = scalar_lea.vmem [#allocation7], %s478
        // Predicated region
        $region53: #{tpu_custom_call.1} parent=43 // pred_check
          %p480 = pneg %p208
        $region54: #{tpu_custom_call.1} parent=43 // pred_check_branch
          %482 = sbr.rel (%p480) target = $region56
        $region55: #{tpu_custom_call.1} parent=43 // pred_region
          %484 = vsyncadd %s476, 0
          %s485 = smul.addr %s26, 4
          %s486 = sadd.s32 %s27, %s485
          %s487 = smul.addr %s486, 8
          %s488 = scalar_lea.hbm %s6, %s487
          %s490 = sshll.u32 %s479, 4
          %s491 = int_to_ptr.vmem [resolvable:$true] %s490
          %s492 = sshll.u32 %s488, 4
          %s493 = int_to_ptr.hbm [resolvable:$true] %s492
          %495 = dma.vmem_to_hbm [thread:$0]  %s491, 128, %s493, %s476
        $region56: #{tpu_custom_call.1} parent=43 // pred_fallthru
          _
      $region44: #{tpu_custom_call.1} parent=5 // pred_fallthru
        _
      %p496 = scmp.le.s32.totalorder 2, %s17
      // Predicated region
      $region57: #{tpu_custom_call.1} parent=5 // pred_check
        %p497 = pneg %p496
      $region58: #{tpu_custom_call.1} parent=5 // pred_check_branch
        %499 = sbr.rel (%p497) target = $region60
      $region59: #{tpu_custom_call.1} parent=5 // pred_region
        %s500 = ssub.s32 %s17, 2
        // Predicated region
        $region61: #{tpu_custom_call.1} parent=59 // pred_check
          %p501 = pneg %p214
        $region62: #{tpu_custom_call.1} parent=59 // pred_check_branch
          %503 = sbr.rel (%p501) target = $region64
        $region63: #{tpu_custom_call.1} parent=59 // pred_region
          %s504 = sand.u32 %s199, 1
          %s505 = scalar_lea.sflag [#allocation3], %s504
          %s506 = sand.u32 %s199, 1
          %s507 = smul.addr %s506, 8
          %s508 = scalar_lea.vmem [#allocation7], %s507
          %510 = dma.done %s505, 128
        $region64: #{tpu_custom_call.1} parent=59 // pred_fallthru
          _
      $region60: #{tpu_custom_call.1} parent=5 // pred_fallthru
        _
    $region6: #{tpu_custom_call.1} parent=1 // loop_footer
      %s21 = sadd.s32 1, %s17
    $region7: #{tpu_custom_call.1} parent=1 // loop_footer_branch
      %16 = sbr.rel target = $region3
    $region8: #{tpu_custom_call.1} parent=1 // loop_exit
      _
    %511 = vsyncpa [#allocation3], 1
    %s512 = scalar_lea.sflag [#allocation3], 1
    %513 = vsyncpa %s512, 1
    %514 = vsyncpa [#allocation4], 1
    %s515 = scalar_lea.sflag [#allocation4], 1
    %516 = vsyncpa %s515, 1
    %517 = vsyncpa [#allocation6], 1

</llo_original>
